<compile_context>
chip_gen: v5e
topology: v5e:2x2
jax: 0.10.0
libtpu: 0.0.40
codegen_flags: <defaults>
</compile_context>

<pallas_src>
import functools

import jax
import jax.numpy as jnp
from jax.experimental import pallas as pl
from jax.experimental.pallas import tpu as pltpu

HIDDEN = 128          # hidden width fixed by the PyTorch module
LANE = 128            # TPU lane width / padding target


def _round_up(x, m):
    return ((x + m - 1) // m) * m


def dqn_kernel(x_ref, w1_ref, b1_ref, w2_ref, b2_ref, w3_ref, b3_ref, o_ref):
    # x_ref: (bm, n_obs_pad) bf16; w*: bf16; b*: f32; o_ref: (bm, NA_PAD) f32
    # layer1 + ReLU (f32 accumulation, f32 elementwise)
    h1 = jnp.dot(x_ref[...], w1_ref[...], preferred_element_type=jnp.float32)
    h1 = jnp.maximum(h1 + b1_ref[...], 0.0)
    # layer2 + ReLU
    h2 = jnp.dot(h1.astype(jnp.bfloat16), w2_ref[...],
                 preferred_element_type=jnp.float32)
    h2 = jnp.maximum(h2 + b2_ref[...], 0.0)
    # layer3 (no activation), lane-dense padded output
    out = jnp.dot(h2.astype(jnp.bfloat16), w3_ref[...],
                  preferred_element_type=jnp.float32)
    o_ref[...] = (out + b3_ref[...]).astype(o_ref.dtype)


@functools.partial(jax.jit, static_argnames=("block_b",))
def dqn_forward(x, params, *, block_b=256):
    """y = relu(relu(x@W1+b1)@W2+b2)@W3+b3, computed in a single pallas_call."""
    w1, b1, w2, b2, w3, b3 = params
    B, n_obs = x.shape
    n_actions = w3.shape[1]
    no_pad = _round_up(max(n_obs, LANE), LANE)       # lane-dense contracting dim
    na_pad = _round_up(max(n_actions, LANE), LANE)   # lane-dense output slab

    # Batch tile: multiple of 8 sublanes, capped at block_b rows per step.
    bm = min(block_b, _round_up(B, 8))
    Bp = _round_up(B, bm)

    # Pad batch/obs dims, cast matmul operands to bf16 (biases stay f32).
    x_p = jnp.pad(x, ((0, Bp - B), (0, no_pad - n_obs))).astype(jnp.bfloat16)
    w1b = jnp.pad(w1, ((0, no_pad - n_obs), (0, 0))).astype(jnp.bfloat16)
    w2b = w2.astype(jnp.bfloat16)
    w3b = jnp.pad(w3, ((0, 0), (0, na_pad - n_actions))).astype(jnp.bfloat16)
    b3p = jnp.pad(b3, ((0, 0), (0, na_pad - n_actions)))

    flops = 2 * Bp * (no_pad * HIDDEN + HIDDEN * HIDDEN + HIDDEN * na_pad)
    bytes_accessed = (
        x_p.size * 2
        + (w1b.size + w2b.size + w3b.size) * 2
        + (b1.size + b2.size + b3p.size) * 4
        + Bp * na_pad * 4
    )

    out = pl.pallas_call(
        dqn_kernel,
        out_shape=jax.ShapeDtypeStruct((Bp, na_pad), jnp.float32),
        grid_spec=pl.GridSpec(
            grid=(Bp // bm,),
            in_specs=[
                pl.BlockSpec((bm, no_pad), lambda i: (i, 0)),       # x (streamed)
                pl.BlockSpec((no_pad, HIDDEN), lambda i: (0, 0)),   # w1 (resident)
                pl.BlockSpec((1, HIDDEN), lambda i: (0, 0)),        # b1
                pl.BlockSpec((HIDDEN, HIDDEN), lambda i: (0, 0)),   # w2
                pl.BlockSpec((1, HIDDEN), lambda i: (0, 0)),        # b2
                pl.BlockSpec((HIDDEN, na_pad), lambda i: (0, 0)),   # w3 (padded)
                pl.BlockSpec((1, na_pad), lambda i: (0, 0)),        # b3 (padded)
            ],
            out_specs=pl.BlockSpec((bm, na_pad), lambda i: (i, 0)),
        ),
        compiler_params=pltpu.CompilerParams(
            dimension_semantics=("parallel",),
        ),
        cost_estimate=pl.CostEstimate(
            flops=flops, transcendentals=0, bytes_accessed=bytes_accessed),
    )(x_p, w1b, b1, w2b, b2, w3b, b3p)

    return out[:B, :n_actions]


def init_dqn_params(key, n_observations, n_actions):
    """Deterministic init mimicking PyTorch nn.Linear default
    (U[-1/sqrt(fan_in), 1/sqrt(fan_in)])."""
    ks = jax.random.split(key, 6)

    def lin(kw, kb, fan_in, fan_out):
        bound = 1.0 / jnp.sqrt(fan_in)
        w = jax.random.uniform(kw, (fan_in, fan_out), jnp.float32, -bound, bound)
        b = jax.random.uniform(kb, (1, fan_out), jnp.float32, -bound, bound)
        return w, b

    w1, b1 = lin(ks[0], ks[1], n_observations, HIDDEN)
    w2, b2 = lin(ks[2], ks[3], HIDDEN, HIDDEN)
    w3, b3 = lin(ks[4], ks[5], HIDDEN, n_actions)
    return (w1, b1, w2, b2, w3, b3)


def _ref_forward_bf16(x, params):
    """Plain-JAX reference with the same bf16-operand / f32-accumulate recipe."""
    w1, b1, w2, b2, w3, b3 = params
    h = jnp.dot(x.astype(jnp.bfloat16), w1.astype(jnp.bfloat16),
                preferred_element_type=jnp.float32)
    h = jnp.maximum(h + b1, 0.0)
    h = jnp.dot(h.astype(jnp.bfloat16), w2.astype(jnp.bfloat16),
                preferred_element_type=jnp.float32)
    h = jnp.maximum(h + b2, 0.0)
    return jnp.dot(h.astype(jnp.bfloat16), w3.astype(jnp.bfloat16),
                   preferred_element_type=jnp.float32) + b3


if __name__ == "__main__":
    key = jax.random.PRNGKey(0)
    k_x, k_p, k_xb = jax.random.split(key, 3)

    B = 2               # batch (single-transition style)
    n_observations = 8
    n_actions = 4

    x = jax.random.normal(k_x, (B, n_observations), jnp.float32)
    params = init_dqn_params(k_p, n_observations, n_actions)

    out = dqn_forward(x, params)
    jax.block_until_ready(out)
    assert out.shape == (B, n_actions)

    # correctness vs. bf16-matched reference and loose check vs. f32 reference
    ref_bf16 = _ref_forward_bf16(x, params)
    assert jnp.allclose(out, ref_bf16, atol=1e-3, rtol=1e-3)

    w1, b1, w2, b2, w3, b3 = params
    h = jnp.maximum(x @ w1 + b1, 0.0)
    h = jnp.maximum(h @ w2 + b2, 0.0)
    ref_f32 = h @ w3 + b3
    assert jnp.allclose(out, ref_f32, atol=5e-2, rtol=5e-2)

    # also exercise a realistic replay-buffer batch to hit the multi-step grid
    xb = jax.random.normal(k_xb, (1000, n_observations), jnp.float32)
    out_b = dqn_forward(xb, params)
    jax.block_until_ready(out_b)
    assert out_b.shape == (1000, n_actions)
    assert jnp.allclose(out_b, _ref_forward_bf16(xb, params), atol=1e-3, rtol=1e-3)

    print("KERNEL_OK")
</pallas_src>

<mosaic_0001>
module attributes {stable_mosaic.version = 11 : i64} {
  func.func @dqn_kernel(%arg0: i32, %arg1: memref<8x128xbf16, #tpu.memory_space<vmem>>, %arg2: memref<128x128xbf16, #tpu.memory_space<vmem>>, %arg3: memref<1x128xf32, #tpu.memory_space<vmem>>, %arg4: memref<128x128xbf16, #tpu.memory_space<vmem>>, %arg5: memref<1x128xf32, #tpu.memory_space<vmem>>, %arg6: memref<128x128xbf16, #tpu.memory_space<vmem>>, %arg7: memref<1x128xf32, #tpu.memory_space<vmem>>, %arg8: memref<8x128xf32, #tpu.memory_space<vmem>>) attributes {dimension_semantics = [#tpu.dimension_semantics<parallel>], iteration_bounds = array<i64: 1>, scalar_prefetch = 0 : i64, scratch_operands = 0 : i64, tpu.core_type = #tpu.core_type<tc>, window_params = [{transform_indices = @transform_0, window_bounds = array<i64: 8, 128>}, {pipeline_mode = #tpu.pipeline_mode<synchronous>, transform_indices = @transform_1, window_bounds = array<i64: 128, 128>}, {pipeline_mode = #tpu.pipeline_mode<synchronous>, transform_indices = @transform_2, window_bounds = array<i64: 1, 128>}, {pipeline_mode = #tpu.pipeline_mode<synchronous>, transform_indices = @transform_3, window_bounds = array<i64: 128, 128>}, {pipeline_mode = #tpu.pipeline_mode<synchronous>, transform_indices = @transform_4, window_bounds = array<i64: 1, 128>}, {pipeline_mode = #tpu.pipeline_mode<synchronous>, transform_indices = @transform_5, window_bounds = array<i64: 128, 128>}, {pipeline_mode = #tpu.pipeline_mode<synchronous>, transform_indices = @transform_6, window_bounds = array<i64: 1, 128>}, {transform_indices = @transform_7, window_bounds = array<i64: 8, 128>}]} {
    %c0 = arith.constant 0 : index
    %c0_0 = arith.constant 0 : index
    %0 = vector.load %arg1[%c0, %c0_0] : memref<8x128xbf16, #tpu.memory_space<vmem>>, vector<8x128xbf16>
    %c0_1 = arith.constant 0 : index
    %c0_2 = arith.constant 0 : index
    %1 = vector.load %arg2[%c0_1, %c0_2] : memref<128x128xbf16, #tpu.memory_space<vmem>>, vector<128x128xbf16>
    %cst = arith.constant dense<0.000000e+00> : vector<8x128xf32>
    %2 = tpu.matmul %0, %1, %cst {dimension_numbers = #tpu.dot_dimension_numbers<[1], [0], [0], [1], [0, 0, 1, 1], [], []>} : vector<8x128xbf16>, vector<128x128xbf16>, vector<8x128xf32> -> vector<8x128xf32>
    %c0_3 = arith.constant 0 : index
    %c0_4 = arith.constant 0 : index
    %3 = vector.load %arg3[%c0_3, %c0_4] : memref<1x128xf32, #tpu.memory_space<vmem>>, vector<1x128xf32>
    %4 = vector.broadcast %3 : vector<1x128xf32> to vector<8x128xf32>
    %5 = arith.addf %2, %4 : vector<8x128xf32>
    %cst_5 = arith.constant 0.000000e+00 : f32
    %6 = vector.broadcast %cst_5 : f32 to vector<8x128xf32>
    %7 = arith.maximumf %5, %6 : vector<8x128xf32>
    %8 = arith.truncf %7 : vector<8x128xf32> to vector<8x128xbf16>
    %c0_6 = arith.constant 0 : index
    %c0_7 = arith.constant 0 : index
    %9 = vector.load %arg4[%c0_6, %c0_7] : memref<128x128xbf16, #tpu.memory_space<vmem>>, vector<128x128xbf16>
    %cst_8 = arith.constant dense<0.000000e+00> : vector<8x128xf32>
    %10 = tpu.matmul %8, %9, %cst_8 {dimension_numbers = #tpu.dot_dimension_numbers<[1], [0], [0], [1], [0, 0, 1, 1], [], []>} : vector<8x128xbf16>, vector<128x128xbf16>, vector<8x128xf32> -> vector<8x128xf32>
    %c0_9 = arith.constant 0 : index
    %c0_10 = arith.constant 0 : index
    %11 = vector.load %arg5[%c0_9, %c0_10] : memref<1x128xf32, #tpu.memory_space<vmem>>, vector<1x128xf32>
    %12 = vector.broadcast %11 : vector<1x128xf32> to vector<8x128xf32>
    %13 = arith.addf %10, %12 : vector<8x128xf32>
    %cst_11 = arith.constant 0.000000e+00 : f32
    %14 = vector.broadcast %cst_11 : f32 to vector<8x128xf32>
    %15 = arith.maximumf %13, %14 : vector<8x128xf32>
    %16 = arith.truncf %15 : vector<8x128xf32> to vector<8x128xbf16>
    %c0_12 = arith.constant 0 : index
    %c0_13 = arith.constant 0 : index
    %17 = vector.load %arg6[%c0_12, %c0_13] : memref<128x128xbf16, #tpu.memory_space<vmem>>, vector<128x128xbf16>
    %cst_14 = arith.constant dense<0.000000e+00> : vector<8x128xf32>
    %18 = tpu.matmul %16, %17, %cst_14 {dimension_numbers = #tpu.dot_dimension_numbers<[1], [0], [0], [1], [0, 0, 1, 1], [], []>} : vector<8x128xbf16>, vector<128x128xbf16>, vector<8x128xf32> -> vector<8x128xf32>
    %c0_15 = arith.constant 0 : index
    %c0_16 = arith.constant 0 : index
    %19 = vector.load %arg7[%c0_15, %c0_16] : memref<1x128xf32, #tpu.memory_space<vmem>>, vector<1x128xf32>
    %20 = vector.broadcast %19 : vector<1x128xf32> to vector<8x128xf32>
    %21 = arith.addf %18, %20 : vector<8x128xf32>
    %c0_17 = arith.constant 0 : index
    %c0_18 = arith.constant 0 : index
    %22 = vector.load %arg8[%c0_17, %c0_18] : memref<8x128xf32, #tpu.memory_space<vmem>>, vector<8x128xf32>
    tpu.vector_store %arg8[%c0_17, %c0_18], %21 {strides = array<i32>} : memref<8x128xf32, #tpu.memory_space<vmem>>, vector<8x128xf32>,
    return
  }
  func.func @transform_0(%arg0: i32) -> (i32, i32) {
    %c0_i32 = arith.constant 0 : i32
    %c0_i32_0 = arith.constant 0 : i32
    return %arg0, %c0_i32 : i32, i32
  }
  func.func @transform_1(%arg0: i32) -> (i32, i32) {
    %c0_i32 = arith.constant 0 : i32
    %c0_i32_0 = arith.constant 0 : i32
    %c0_i32_1 = arith.constant 0 : i32
    return %c0_i32, %c0_i32_0 : i32, i32
  }
  func.func @transform_2(%arg0: i32) -> (i32, i32) {
    %c0_i32 = arith.constant 0 : i32
    %c0_i32_0 = arith.constant 0 : i32
    %c0_i32_1 = arith.constant 0 : i32
    return %c0_i32, %c0_i32_0 : i32, i32
  }
  func.func @transform_3(%arg0: i32) -> (i32, i32) {
    %c0_i32 = arith.constant 0 : i32
    %c0_i32_0 = arith.constant 0 : i32
    %c0_i32_1 = arith.constant 0 : i32
    return %c0_i32, %c0_i32_0 : i32, i32
  }
  func.func @transform_4(%arg0: i32) -> (i32, i32) {
    %c0_i32 = arith.constant 0 : i32
    %c0_i32_0 = arith.constant 0 : i32
    %c0_i32_1 = arith.constant 0 : i32
    return %c0_i32, %c0_i32_0 : i32, i32
  }
  func.func @transform_5(%arg0: i32) -> (i32, i32) {
    %c0_i32 = arith.constant 0 : i32
    %c0_i32_0 = arith.constant 0 : i32
    %c0_i32_1 = arith.constant 0 : i32
    return %c0_i32, %c0_i32_0 : i32, i32
  }
  func.func @transform_6(%arg0: i32) -> (i32, i32) {
    %c0_i32 = arith.constant 0 : i32
    %c0_i32_0 = arith.constant 0 : i32
    %c0_i32_1 = arith.constant 0 : i32
    return %c0_i32, %c0_i32_0 : i32, i32
  }
  func.func @transform_7(%arg0: i32) -> (i32, i32) {
    %c0_i32 = arith.constant 0 : i32
    %c0_i32_0 = arith.constant 0 : i32
    return %arg0, %c0_i32 : i32, i32
  }
}

</mosaic_0001>

<llo_original>
// kernel: dqn_forward.1
$region0: #{dqn_forward.1}
  #allocation0 [shape = 'u32[]', space=smem, size = 0x4, offset = 0x4, fixed_abs, tag = 'smem constant byte address 0x4 - core index']
  #allocation1 [shape = 'u32[72,128]{1,0:T(1,128)}', space=vmem, size = 0x9000, scoped, tag = 'internal scratch']
  %s0 = inlined_call_operand.vmem [shape: bf16[8,128], index: 0, kind: input, shape index: {}]
  %s1 = inlined_call_operand.vmem [shape: bf16[128,128], index: 1, kind: input, shape index: {}]
  %s2 = inlined_call_operand.vmem [shape: f32[1,128], index: 2, kind: input, shape index: {}]
  %s3 = inlined_call_operand.vmem [shape: bf16[128,128], index: 3, kind: input, shape index: {}]
  %s4 = inlined_call_operand.vmem [shape: f32[1,128], index: 4, kind: input, shape index: {}]
  %s5 = inlined_call_operand.vmem [shape: bf16[128,128], index: 5, kind: input, shape index: {}]
  %s6 = inlined_call_operand.vmem [shape: f32[1,128], index: 6, kind: input, shape index: {}]
  %s7 = inlined_call_operand.vmem [shape: f32[8,128], index: 7, kind: output, shape index: {}]
  %s8 = sld [smem:[#allocation0]]
  $region38: #{dqn_forward.1} parent=0
    _
  %s10 = ssub.s32 1, %s8
  %s11 = scalar_select 0, %s10, %s8
  // Predicated region
  $region2: #{dqn_forward.1} parent=0 // pred_check
    _
  $region3: #{dqn_forward.1} parent=0 // pred_check_branch
    %13 = sbr.rel (0) target = $region5
  $region4: #{dqn_forward.1} parent=0 // pred_region
    _
  $region5: #{dqn_forward.1} parent=0 // pred_fallthru
    _
  // Predicated region
  $region6: #{dqn_forward.1} parent=0 // pred_check
    _
  $region7: #{dqn_forward.1} parent=0 // pred_check_branch
    %15 = sbr.rel (0) target = $region9
  $region8: #{dqn_forward.1} parent=0 // pred_region
    _
  $region9: #{dqn_forward.1} parent=0 // pred_fallthru
    _
  // Predicated region
  $region10: #{dqn_forward.1} parent=0 // pred_check
    _
  $region11: #{dqn_forward.1} parent=0 // pred_check_branch
    %17 = sbr.rel (0) target = $region13
  $region12: #{dqn_forward.1} parent=0 // pred_region
    _
  $region13: #{dqn_forward.1} parent=0 // pred_fallthru
    _
  // Predicated region
  $region14: #{dqn_forward.1} parent=0 // pred_check
    _
  $region15: #{dqn_forward.1} parent=0 // pred_check_branch
    %19 = sbr.rel (0) target = $region17
  $region16: #{dqn_forward.1} parent=0 // pred_region
    _
  $region17: #{dqn_forward.1} parent=0 // pred_fallthru
    _
  // Predicated region
  $region18: #{dqn_forward.1} parent=0 // pred_check
    _
  $region19: #{dqn_forward.1} parent=0 // pred_check_branch
    %21 = sbr.rel (0) target = $region21
  $region20: #{dqn_forward.1} parent=0 // pred_region
    _
  $region21: #{dqn_forward.1} parent=0 // pred_fallthru
    _
  // Predicated region
  $region22: #{dqn_forward.1} parent=0 // pred_check
    _
  $region23: #{dqn_forward.1} parent=0 // pred_check_branch
    %23 = sbr.rel (0) target = $region25
  $region24: #{dqn_forward.1} parent=0 // pred_region
    _
  $region25: #{dqn_forward.1} parent=0 // pred_fallthru
    _
  // Predicated region
  $region26: #{dqn_forward.1} parent=0 // pred_check
    _
  $region27: #{dqn_forward.1} parent=0 // pred_check_branch
    %25 = sbr.rel (0) target = $region29
  $region28: #{dqn_forward.1} parent=0 // pred_region
    _
  $region29: #{dqn_forward.1} parent=0 // pred_fallthru
    _
  %v26 = vld [vmem:[%s0] sm:$0xf]
  %v27 = vld [vmem:[%s1] sm:$0xf]
  %v28 = vld [vmem:[%s1 + $0x4] sm:$0xf]
  %v29 = vld [vmem:[%s1 + $0x8] sm:$0xf]
  %v30 = vld [vmem:[%s1 + $0xc] sm:$0xf]
  %v31 = vld [vmem:[%s1 + $0x10] sm:$0xf]
  %v32 = vld [vmem:[%s1 + $0x14] sm:$0xf]
  %v33 = vld [vmem:[%s1 + $0x18] sm:$0xf]
  %v34 = vld [vmem:[%s1 + $0x1c] sm:$0xf]
  %v35 = vld [vmem:[%s1 + $0x20] sm:$0xf]
  %v36 = vld [vmem:[%s1 + $0x24] sm:$0xf]
  %v37 = vld [vmem:[%s1 + $0x28] sm:$0xf]
  %v38 = vld [vmem:[%s1 + $0x2c] sm:$0xf]
  %v39 = vld [vmem:[%s1 + $0x30] sm:$0xf]
  %v40 = vld [vmem:[%s1 + $0x34] sm:$0xf]
  %v41 = vld [vmem:[%s1 + $0x38] sm:$0xf]
  %v42 = vld [vmem:[%s1 + $0x3c] sm:$0xf]
  %v43 = vld [vmem:[%s2] sm:$0x1]
  %v45 = vperm.slane %v43, 0
  %v63 = vunpack.c.l.b16 %v27
  %v64 = vunpack.c.l.b16 %v28
  %v65 = vunpack.c.l.b16 %v29
  %v66 = vunpack.c.l.b16 %v30
  %v67 = vunpack.c.l.b16 %v31
  %v68 = vunpack.c.l.b16 %v32
  %v69 = vunpack.c.l.b16 %v33
  %v70 = vunpack.c.l.b16 %v34
  %v71 = vunpack.c.l.b16 %v35
  %v72 = vunpack.c.l.b16 %v36
  %v73 = vunpack.c.l.b16 %v37
  %v74 = vunpack.c.l.b16 %v38
  %v75 = vunpack.c.l.b16 %v39
  %v76 = vunpack.c.l.b16 %v40
  %v77 = vunpack.c.l.b16 %v41
  %v78 = vunpack.c.l.b16 %v42
  %v79 = vpack.c.b16 %v64, %v63
  %v80 = vpack.c.b16 %v66, %v65
  %v81 = vpack.c.b16 %v68, %v67
  %v82 = vpack.c.b16 %v70, %v69
  %v83 = vpack.c.b16 %v72, %v71
  %v84 = vpack.c.b16 %v74, %v73
  %v85 = vpack.c.b16 %v76, %v75
  %v86 = vpack.c.b16 %v78, %v77
  %95 = vmatpush.bf16.msra.mxu0 %v86
  %96 = vmatpush.bf16.msra.mxu0 %v85
  %97 = vmatpush.bf16.msra.mxu0 %v84
  %98 = vmatpush.bf16.msra.mxu0 %v83
  %99 = vmatpush.bf16.msra.mxu0 %v82
  %100 = vmatpush.bf16.msra.mxu0 %v81
  %101 = vmatpush.bf16.msra.mxu0 %v80
  %102 = vmatpush.bf16.msra.mxu0 %v79
  %103 = vmatmul.bf16.gmra.mxu0 %v26
  %v104 = vpop.f32.mrf.mxu0
  %v105 = vadd.f32 %v45, %v104
  %v106 = vpop.f32.mrf.mxu0
  %107 = vdwg.mxu0
  %v108 = vmax.f32 %v105, 0.0
  %v109 = vpack.c.bf16 %v108, %v108
  %v110 = vld [vmem:[%s3] sm:$0xf]
  %v111 = vld [vmem:[%s3 + $0x4] sm:$0xf]
  %v112 = vld [vmem:[%s3 + $0x8] sm:$0xf]
  %v113 = vld [vmem:[%s3 + $0xc] sm:$0xf]
  %v114 = vld [vmem:[%s3 + $0x10] sm:$0xf]
  %v115 = vld [vmem:[%s3 + $0x14] sm:$0xf]
  %v116 = vld [vmem:[%s3 + $0x18] sm:$0xf]
  %v117 = vld [vmem:[%s3 + $0x1c] sm:$0xf]
  %v118 = vld [vmem:[%s3 + $0x20] sm:$0xf]
  %v119 = vld [vmem:[%s3 + $0x24] sm:$0xf]
  %v120 = vld [vmem:[%s3 + $0x28] sm:$0xf]
  %v121 = vld [vmem:[%s3 + $0x2c] sm:$0xf]
  %v122 = vld [vmem:[%s3 + $0x30] sm:$0xf]
  %v123 = vld [vmem:[%s3 + $0x34] sm:$0xf]
  %v124 = vld [vmem:[%s3 + $0x38] sm:$0xf]
  %v125 = vld [vmem:[%s3 + $0x3c] sm:$0xf]
  %v126 = vld [vmem:[%s4] sm:$0x1]
  %v128 = vperm.slane %v126, 0
  %v146 = vunpack.c.l.b16 %v110
  %v147 = vunpack.c.l.b16 %v111
  %v148 = vunpack.c.l.b16 %v112
  %v149 = vunpack.c.l.b16 %v113
  %v150 = vunpack.c.l.b16 %v114
  %v151 = vunpack.c.l.b16 %v115
  %v152 = vunpack.c.l.b16 %v116
  %v153 = vunpack.c.l.b16 %v117
  %v154 = vunpack.c.l.b16 %v118
  %v155 = vunpack.c.l.b16 %v119
  %v156 = vunpack.c.l.b16 %v120
  %v157 = vunpack.c.l.b16 %v121
  %v158 = vunpack.c.l.b16 %v122
  %v159 = vunpack.c.l.b16 %v123
  %v160 = vunpack.c.l.b16 %v124
  %v161 = vunpack.c.l.b16 %v125
  %v162 = vpack.c.b16 %v147, %v146
  %v163 = vpack.c.b16 %v149, %v148
  %v164 = vpack.c.b16 %v151, %v150
  %v165 = vpack.c.b16 %v153, %v152
  %v166 = vpack.c.b16 %v155, %v154
  %v167 = vpack.c.b16 %v157, %v156
  %v168 = vpack.c.b16 %v159, %v158
  %v169 = vpack.c.b16 %v161, %v160
  %178 = vmatpush.bf16.msra.mxu0 %v169
  %179 = vmatpush.bf16.msra.mxu0 %v168
  %180 = vmatpush.bf16.msra.mxu0 %v167
  %181 = vmatpush.bf16.msra.mxu0 %v166
  %182 = vmatpush.bf16.msra.mxu0 %v165
  %183 = vmatpush.bf16.msra.mxu0 %v164
  %184 = vmatpush.bf16.msra.mxu0 %v163
  %185 = vmatpush.bf16.msra.mxu0 %v162
  %186 = vmatmul.bf16.gmra.mxu0 %v109
  %v187 = vpop.f32.mrf.mxu0
  %v188 = vadd.f32 %v128, %v187
  %v189 = vpop.f32.mrf.mxu0
  %190 = vdwg.mxu0
  %v191 = vmax.f32 %v188, 0.0
  %v192 = vpack.c.bf16 %v191, %v191
  %v193 = vld [vmem:[%s5] sm:$0xf]
  %v194 = vld [vmem:[%s5 + $0x4] sm:$0xf]
  %v195 = vld [vmem:[%s5 + $0x8] sm:$0xf]
  %v196 = vld [vmem:[%s5 + $0xc] sm:$0xf]
  %v197 = vld [vmem:[%s5 + $0x10] sm:$0xf]
  %v198 = vld [vmem:[%s5 + $0x14] sm:$0xf]
  %v199 = vld [vmem:[%s5 + $0x18] sm:$0xf]
  %v200 = vld [vmem:[%s5 + $0x1c] sm:$0xf]
  %v201 = vld [vmem:[%s5 + $0x20] sm:$0xf]
  %v202 = vld [vmem:[%s5 + $0x24] sm:$0xf]
  %v203 = vld [vmem:[%s5 + $0x28] sm:$0xf]
  %v204 = vld [vmem:[%s5 + $0x2c] sm:$0xf]
  %v205 = vld [vmem:[%s5 + $0x30] sm:$0xf]
  %v206 = vld [vmem:[%s5 + $0x34] sm:$0xf]
  %v207 = vld [vmem:[%s5 + $0x38] sm:$0xf]
  %v208 = vld [vmem:[%s5 + $0x3c] sm:$0xf]
  %v209 = vld [vmem:[%s6] sm:$0x1]
  %v211 = vperm.slane %v209, 0
  %v229 = vunpack.c.l.b16 %v193
  %v230 = vunpack.c.l.b16 %v194
  %v231 = vunpack.c.l.b16 %v195
  %v232 = vunpack.c.l.b16 %v196
  %v233 = vunpack.c.l.b16 %v197
  %v234 = vunpack.c.l.b16 %v198
  %v235 = vunpack.c.l.b16 %v199
  %v236 = vunpack.c.l.b16 %v200
  %v237 = vunpack.c.l.b16 %v201
  %v238 = vunpack.c.l.b16 %v202
  %v239 = vunpack.c.l.b16 %v203
  %v240 = vunpack.c.l.b16 %v204
  %v241 = vunpack.c.l.b16 %v205
  %v242 = vunpack.c.l.b16 %v206
  %v243 = vunpack.c.l.b16 %v207
  %v244 = vunpack.c.l.b16 %v208
  %v245 = vpack.c.b16 %v230, %v229
  %v246 = vpack.c.b16 %v232, %v231
  %v247 = vpack.c.b16 %v234, %v233
  %v248 = vpack.c.b16 %v236, %v235
  %v249 = vpack.c.b16 %v238, %v237
  %v250 = vpack.c.b16 %v240, %v239
  %v251 = vpack.c.b16 %v242, %v241
  %v252 = vpack.c.b16 %v244, %v243
  %261 = vmatpush.bf16.msra.mxu0 %v252
  %262 = vmatpush.bf16.msra.mxu0 %v251
  %263 = vmatpush.bf16.msra.mxu0 %v250
  %264 = vmatpush.bf16.msra.mxu0 %v249
  %265 = vmatpush.bf16.msra.mxu0 %v248
  %266 = vmatpush.bf16.msra.mxu0 %v247
  %267 = vmatpush.bf16.msra.mxu0 %v246
  %268 = vmatpush.bf16.msra.mxu0 %v245
  %269 = vmatmul.bf16.gmra.mxu0 %v192
  %v270 = vpop.f32.mrf.mxu0
  %v271 = vadd.f32 %v211, %v270
  %v272 = vpop.f32.mrf.mxu0
  %273 = vdwg.mxu0
  %274 = vst [vmem:[%s7] sm:$0xff] %v271
  // Predicated region
  $region30: #{dqn_forward.1} parent=0 // pred_check
    _
  $region31: #{dqn_forward.1} parent=0 // pred_check_branch
    %276 = sbr.rel (0) target = $region33
  $region32: #{dqn_forward.1} parent=0 // pred_region
    _
  $region33: #{dqn_forward.1} parent=0 // pred_fallthru
    _
  // Predicated region
  $region34: #{dqn_forward.1} parent=0 // pred_check
    _
  $region35: #{dqn_forward.1} parent=0 // pred_check_branch
    %278 = sbr.rel (0) target = $region37
  $region36: #{dqn_forward.1} parent=0 // pred_region
    _
  $region37: #{dqn_forward.1} parent=0 // pred_fallthru
    _

</llo_original>
